<compile_context>
chip_gen: v6e
topology: v6e:2x2x1
jax: 0.10.0
libtpu: 0.0.40
codegen_flags: <defaults>
</compile_context>

<pallas_src>
import functools

import jax
import jax.numpy as jnp
from jax.experimental import pallas as pl
from jax.experimental.pallas import tpu as pltpu


def _round_up(x, m):
    return ((x + m - 1) // m) * m


# ----------------------- grouped expert kernel (Pallas) ----------------------- #
def _grouped_expert_kernel(tile_group_ref,       # scalar prefetch: (num_tiles,) i32 SMEM
                           tile_rows_ref,        # scalar prefetch: (num_tiles,) i32 SMEM
                           x_ref,                # (TM, D)  bf16   rows of one expert
                           gate_ref,             # (TM, 1)  f32    gate column (0 for padding)
                           w1_ref, w2_ref,       # (D, D)   bf16   GLU halves (b_exp folded in w2)
                           wout_ref,             # (D, D)   bf16   linear_out weight
                           bout_ref,             # (1, D)   f32    linear_out bias
                           y_ref):               # (TM, D)  bf16   gate-weighted expert output
    del tile_group_ref  # consumed only by the index_maps
    t = pl.program_id(0)
    rows = tile_rows_ref[t]

    @pl.when(rows > 0)
    def _():
        x = x_ref[...]
        # GLU branch matmuls on the MXU: bf16 inputs, f32 accumulation.
        h1 = jnp.dot(x, w1_ref[...], preferred_element_type=jnp.float32)
        h2 = jnp.dot(x, w2_ref[...], preferred_element_type=jnp.float32)
        # Elementwise math in f32 (v5e has no bf16 VPU/EUP). GELU (tanh) assumed.
        y = jax.nn.gelu(h1, approximate=True) * h2
        out = jnp.dot(y.astype(wout_ref.dtype), wout_ref[...],
                      preferred_element_type=jnp.float32) + bout_ref[...]
        # Gate column delivered via BlockSpec: single multiply, zero on padding rows.
        y_ref[...] = (out * gate_ref[...]).astype(y_ref.dtype)

    @pl.when(rows == 0)
    def _():
        # Fully padded tile: skip the matmuls entirely; output is never gathered.
        y_ref[...] = jnp.zeros_like(y_ref)


def grouped_experts(tile_group, tile_rows, x_grouped, gate_grouped,
                    w1, w2, w_out, b_out, *, tm):
    P, D = x_grouped.shape
    num_tiles = P // tm
    E = w1.shape[0]

    # Single-buffer the three DxD weight streams when double-buffering them is
    # expensive (v7x 64 MiB VMEM); tiles are expert-sorted so the weight block index
    # rarely changes and the exposed DMA is negligible.
    weight_dbl_bytes = 3 * D * D * 2 * 2
    weight_bufs = 1 if weight_dbl_bytes > (24 << 20) else 2
    w_kwargs = {} if weight_bufs == 2 else {"pipeline_mode": pl.Buffered(weight_bufs)}

    def w_spec():
        return pl.BlockSpec((pl.Squeezed(), D, D),
                            lambda t, g, r: (g[t], 0, 0), **w_kwargs)

    grid_spec = pltpu.PrefetchScalarGridSpec(
        num_scalar_prefetch=2,                       # tile->expert, tile->valid rows
        grid=(num_tiles,),
        in_specs=[
            pl.BlockSpec((tm, D), lambda t, g, r: (t, 0)),                       # x rows
            pl.BlockSpec((tm, 1), lambda t, g, r: (t, 0)),                       # gate col
            w_spec(),                                                            # w_in half 1
            w_spec(),                                                            # w_in half 2 (b_exp folded)
            w_spec(),                                                            # w_out
            pl.BlockSpec((pl.Squeezed(), 1, D), lambda t, g, r: (g[t], 0, 0)),   # b_out
        ],
        out_specs=pl.BlockSpec((tm, D), lambda t, g, r: (t, 0)),
    )

    # ---- VMEM budget derived from shapes, capped below the chip's physical VMEM ----
    try:
        phys_vmem = pltpu.get_tpu_info().vmem_capacity_bytes
    except Exception:
        phys_vmem = 64 << 20                         # conservative (v7x per-TC)
    weight_bytes = 3 * D * D * 2 * weight_bufs
    stream_bytes = (2 * tm * D * 2 +                 # x, double-buffered bf16
                    2 * tm * D * 2 +                 # out, double-buffered bf16
                    2 * tm * 128 * 4 +               # gate col (lane-padded f32)
                    2 * 8 * D * 4)                   # b_out (sublane-padded f32)
    scratch_bytes = 4 * tm * D * 4                   # f32 intermediates h1/h2/y/out
    vmem_limit = int(1.5 * (weight_bytes + stream_bytes + scratch_bytes)) + (8 << 20)
    vmem_limit = max(16 << 20, min(vmem_limit, phys_vmem - (8 << 20)))

    # Advisory cost estimate so XLA overlaps the surrounding dispatch/combine ops.
    cost = pl.CostEstimate(
        flops=6 * P * D * D,
        transcendentals=P * D,
        bytes_accessed=2 * (2 * P * D) + 4 * P + E * (3 * D * D + D) * 2,
    )

    return pl.pallas_call(
        _grouped_expert_kernel,
        out_shape=jax.ShapeDtypeStruct((P, D), jnp.bfloat16),
        grid_spec=grid_spec,
        compiler_params=pltpu.CompilerParams(
            # Every tile is independent (distinct output block) -> megacore sharding.
            dimension_semantics=("parallel",),
            vmem_limit_bytes=vmem_limit,
        ),
        cost_estimate=cost,
    )(tile_group, tile_rows, x_grouped, gate_grouped, w1, w2, w_out, b_out)


# ------------------------------- SMoE forward -------------------------------- #
def smoe_forward(x, params, top_k, *, block_rows=512):
    B, T, D = x.shape
    N = B * T
    K = top_k
    E = params["w_r"].shape[1]
    x_flat = x.reshape(N, D)

    # ---- router (plain JAX: tiny E-wide output, not worth a Pallas call) ----
    logits = x_flat @ params["w_r"] + params["b_r"]                    # (N, E) f32
    _, top_idx = jax.lax.top_k(logits, K)                              # (N, K)
    mask = (jax.nn.one_hot(top_idx, E) > 0).any(axis=-2)               # (N, E)
    sparse = jnp.where(mask, logits, -jnp.inf)
    gates = jax.nn.softmax(sparse, axis=-1)                            # exactly 0 off top-k
    # z-loss matches the PyTorch source: logsumexp over the *sparse* logits.
    z_loss = jnp.mean(jax.scipy.special.logsumexp(sparse, axis=-1) ** 2)

    # ---- grouped dispatch: expert-sorted, tile-padded, built with pure gathers ----
    A = N * K
    # tm: multiple of 128 (MXU/lane aligned); capped so the grid has >= ~8 tiles for
    # v7x megacore even at small A; never below 128.
    tm = min(_round_up(block_rows, 128), _round_up(max(A // 8, 1), 128))
    tm = max(128, tm)

    flat_expert = top_idx.reshape(A).astype(jnp.int32)
    flat_token = jnp.broadcast_to(jnp.arange(N, dtype=jnp.int32)[:, None],
                                  (N, K)).reshape(A)
    flat_gate = jnp.take_along_axis(gates, top_idx, axis=1).reshape(A)

    order = jnp.argsort(flat_expert, stable=True)
    sorted_expert = flat_expert[order]
    sorted_token = flat_token[order]
    sorted_gate = flat_gate[order]

    counts = jnp.bincount(flat_expert, length=E).astype(jnp.int32)     # (E,)
    group_start = jnp.cumsum(counts) - counts                          # exclusive
    padded_sizes = ((counts + tm - 1) // tm) * tm                      # per-expert, mult of tm
    padded_end = jnp.cumsum(padded_sizes)
    padded_start = padded_end - padded_sizes

    num_tiles = pl.cdiv(A, tm) + E          # static upper bound on expert-homogeneous tiles
    P = num_tiles * tm

    # tile -> owning expert (trailing tiles clamped; their row count is 0 -> skipped).
    tile_start = jnp.arange(num_tiles, dtype=jnp.int32) * tm
    tile_group = jnp.minimum(
        jnp.searchsorted(padded_end, tile_start, side="right"), E - 1).astype(jnp.int32)
    tile_rows = jnp.clip(counts[tile_group] - (tile_start - padded_start[tile_group]),
                         0, tm).astype(jnp.int32)

    # grouped-row -> (sorted assignment) map: pure gather dispatch, no (P, D) scatter.
    row = jnp.arange(P, dtype=jnp.int32)
    row_expert = tile_group[row // tm]
    off = row - padded_start[row_expert]
    row_valid = (off >= 0) & (off < counts[row_expert])
    src = jnp.clip(group_start[row_expert] + off, 0, A - 1)
    row_tok = jnp.where(row_valid, sorted_token[src], 0)
    row_gate = jnp.where(row_valid, sorted_gate[src], 0.0)

    x_grouped = x_flat[row_tok].astype(jnp.bfloat16)                   # (P, D) row gather
    gate_grouped = row_gate[:, None].astype(jnp.float32)               # (P, 1)

    # ---- expert params: GLU halves, b_exp folded into w2's columns, bf16 for MXU ----
    w1 = params["w_in"][:, :, :D].astype(jnp.bfloat16)
    w2 = (params["w_in"][:, :, D:] * params["b_exp"][:, None, :]).astype(jnp.bfloat16)
    w_out = params["w_out"].astype(jnp.bfloat16)
    b_out = params["b_out"].reshape(E, 1, D).astype(jnp.float32)

    y_grouped = grouped_experts(tile_group, tile_rows, x_grouped, gate_grouped,
                                w1, w2, w_out, b_out, tm=tm)

    # ---- combine: gather each assignment's grouped row + dense K-way sum ----
    dest_sorted = padded_start[sorted_expert] + (jnp.arange(A, dtype=jnp.int32)
                                                 - group_start[sorted_expert])
    inv_order = jnp.argsort(order)              # inverse permutation of the expert sort
    dest_flat = dest_sorted[inv_order]          # (A,) grouped row for each (token, k)
    y_assign = y_grouped[dest_flat].astype(jnp.float32)                # (A, D) gather
    out_flat = y_assign.reshape(N, K, D).sum(axis=1)                   # f32 K-way reduce
    return out_flat.reshape(B, T, D), z_loss


# ------------------------------ pure-JAX reference ---------------------------- #
def smoe_reference(x, params, top_k):
    B, T, D = x.shape
    xf = x.reshape(-1, D)
    logits = xf @ params["w_r"] + params["b_r"]
    E = logits.shape[-1]
    _, ti = jax.lax.top_k(logits, top_k)
    mask = (jax.nn.one_hot(ti, E) > 0).any(axis=-2)
    sparse = jnp.where(mask, logits, -jnp.inf)
    gates = jax.nn.softmax(sparse, axis=-1)
    z = jnp.mean(jax.scipy.special.logsumexp(sparse, axis=-1) ** 2)
    xb = xf.astype(jnp.bfloat16)
    out = jnp.zeros_like(xf)
    for e in range(E):
        w1 = params["w_in"][e, :, :D].astype(jnp.bfloat16)
        w2 = params["w_in"][e, :, D:].astype(jnp.bfloat16)
        h1 = jnp.dot(xb, w1, preferred_element_type=jnp.float32)
        h2 = jnp.dot(xb, w2, preferred_element_type=jnp.float32)
        y = jax.nn.gelu(h1, approximate=True) * h2 * params["b_exp"][e]
        eo = jnp.dot(y.astype(jnp.bfloat16),
                     params["w_out"][e].astype(jnp.bfloat16),
                     preferred_element_type=jnp.float32) + params["b_out"][e]
        out = out + gates[:, e:e + 1] * eo
    return out.reshape(B, T, D), z


if __name__ == "__main__":
    # D is a multiple of 128 so blocks are lane-dense and the MXU is actually used
    # (the review flagged D=32 as meaningless for benchmarking).
    D, E_EXPERTS, TOP_K = 128, 4, 2
    B, T = 2, 16

    key = jax.random.PRNGKey(0)
    k = jax.random.split(key, 6)
    params = {
        "w_r": 0.02 * jax.random.normal(k[0], (D, E_EXPERTS), jnp.float32),
        "b_r": 0.02 * jax.random.normal(k[1], (E_EXPERTS,), jnp.float32),
        "w_in": 0.05 * jax.random.normal(k[2], (E_EXPERTS, D, 2 * D), jnp.float32),
        "b_exp": jnp.ones((E_EXPERTS, D), jnp.float32),   # nn.Parameter(torch.ones(dim))
        "w_out": 0.05 * jax.random.normal(k[3], (E_EXPERTS, D, D), jnp.float32),
        "b_out": 0.02 * jax.random.normal(k[4], (E_EXPERTS, D), jnp.float32),
    }
    x = jax.random.normal(k[5], (B, T, D), jnp.float32)

    fwd = jax.jit(functools.partial(smoe_forward, top_k=TOP_K))
    out, z_loss = fwd(x, params)
    out = jax.block_until_ready(out)
    z_loss = jax.block_until_ready(z_loss)

    ref_out, ref_z = smoe_reference(x, params, TOP_K)
    assert out.shape == (B, T, D)
    # bf16 kernel output (f32 accumulation) -> ~1e-3-level deviation from the f32 ref.
    assert jnp.allclose(out, ref_out, atol=5e-3, rtol=5e-3), \
        float(jnp.max(jnp.abs(out - ref_out)))
    assert jnp.allclose(z_loss, ref_z, atol=1e-4, rtol=1e-4)

    print("KERNEL_OK")
</pallas_src>

<mosaic_0001>
module attributes {stable_mosaic.version = 11 : i64} {
  func.func private @main(%arg0: i32) attributes {dimension_semantics = [#tpu.dimension_semantics<core_parallel>], iteration_bounds = array<i64: 2>, tpu.core_type = #tpu.core_type<sc_scalar_subcore>, window_params = []} {
    return
  }
}

module attributes {stable_mosaic.version = 11 : i64} {
  func.func private @main(%arg0: i32) attributes {dimension_semantics = [#tpu.dimension_semantics<core_parallel>], iteration_bounds = array<i64: 2>, tpu.core_type = #tpu.core_type<sc_scalar_subcore>, window_params = []} {
    return
  }
}

module attributes {stable_mosaic.version = 11 : i64} {
  func.func @_grouped_expert_kernel(%arg0: i32, %arg1: memref<5xi32, #tpu.memory_space<smem>>, %arg2: memref<5xi32, #tpu.memory_space<smem>>, %arg3: memref<128x128xbf16, #tpu.memory_space<vmem>>, %arg4: memref<128x1xf32, #tpu.memory_space<vmem>>, %arg5: memref<1x128x128xbf16, #tpu.memory_space<vmem>>, %arg6: memref<1x128x128xbf16, #tpu.memory_space<vmem>>, %arg7: memref<1x128x128xbf16, #tpu.memory_space<vmem>>, %arg8: memref<1x1x128xf32, #tpu.memory_space<vmem>>, %arg9: memref<128x128xbf16, #tpu.memory_space<vmem>>) attributes {dimension_semantics = [#tpu.dimension_semantics<parallel>], iteration_bounds = array<i64: 5>, scalar_prefetch = 2 : i64, scratch_operands = 0 : i64, tpu.core_type = #tpu.core_type<tc>, window_params = [{transform_indices = @transform_0, window_bounds = array<i64: 128, 128>}, {transform_indices = @transform_1, window_bounds = array<i64: 128, 1>}, {transform_indices = @transform_2, window_bounds = array<i64: 1, 128, 128>}, {transform_indices = @transform_3, window_bounds = array<i64: 1, 128, 128>}, {transform_indices = @transform_4, window_bounds = array<i64: 1, 128, 128>}, {transform_indices = @transform_5, window_bounds = array<i64: 1, 1, 128>}, {transform_indices = @transform_6, window_bounds = array<i64: 128, 128>}]} {
    %0 = arith.index_cast %arg0 : i32 to index
    %1 = memref.load %arg2[%0] : memref<5xi32, #tpu.memory_space<smem>>
    %c0_i32 = arith.constant 0 : i32
    %2 = arith.cmpi sgt, %1, %c0_i32 : i32
    %3 = arith.extui %2 : i1 to i32
    %c0_i32_0 = arith.constant 0 : i32
    %4 = arith.cmpi ne, %3, %c0_i32_0 : i32
    scf.if %4 {
      %c0 = arith.constant 0 : index
      %c0_3 = arith.constant 0 : index
      %8 = vector.load %arg3[%c0, %c0_3] : memref<128x128xbf16, #tpu.memory_space<vmem>>, vector<128x128xbf16>
      %c0_4 = arith.constant 0 : index
      %c0_5 = arith.constant 0 : index
      %c0_6 = arith.constant 0 : index
      %9 = vector.load %arg5[%c0_4, %c0_5, %c0_6] : memref<1x128x128xbf16, #tpu.memory_space<vmem>>, vector<1x128x128xbf16>
      %10 = vector.shape_cast %9 : vector<1x128x128xbf16> to vector<128x128xbf16>
      %cst = arith.constant dense<0.000000e+00> : vector<128x128xf32>
      %11 = tpu.matmul %8, %10, %cst {dimension_numbers = #tpu.dot_dimension_numbers<[1], [0], [0], [1], [0, 0, 1, 1], [], []>} : vector<128x128xbf16>, vector<128x128xbf16>, vector<128x128xf32> -> vector<128x128xf32>
      %c0_7 = arith.constant 0 : index
      %c0_8 = arith.constant 0 : index
      %c0_9 = arith.constant 0 : index
      %12 = vector.load %arg6[%c0_7, %c0_8, %c0_9] : memref<1x128x128xbf16, #tpu.memory_space<vmem>>, vector<1x128x128xbf16>
      %13 = vector.shape_cast %12 : vector<1x128x128xbf16> to vector<128x128xbf16>
      %cst_10 = arith.constant dense<0.000000e+00> : vector<128x128xf32>
      %14 = tpu.matmul %8, %13, %cst_10 {dimension_numbers = #tpu.dot_dimension_numbers<[1], [0], [0], [1], [0, 0, 1, 1], [], []>} : vector<128x128xbf16>, vector<128x128xbf16>, vector<128x128xf32> -> vector<128x128xf32>
      %15 = arith.mulf %11, %11 : vector<128x128xf32>
      %16 = arith.mulf %11, %15 : vector<128x128xf32>
      %cst_11 = arith.constant 4.471500e-02 : f32
      %17 = vector.broadcast %cst_11 : f32 to vector<128x128xf32>
      %18 = arith.mulf %17, %16 : vector<128x128xf32>
      %19 = arith.addf %11, %18 : vector<128x128xf32>
      %cst_12 = arith.constant 0.797884583 : f32
      %20 = vector.broadcast %cst_12 : f32 to vector<128x128xf32>
      %21 = arith.mulf %20, %19 : vector<128x128xf32>
      %22 = math.tanh %21 : vector<128x128xf32>
      %cst_13 = arith.constant 1.000000e+00 : f32
      %23 = vector.broadcast %cst_13 : f32 to vector<128x128xf32>
      %24 = arith.addf %23, %22 : vector<128x128xf32>
      %cst_14 = arith.constant 5.000000e-01 : f32
      %25 = vector.broadcast %cst_14 : f32 to vector<128x128xf32>
      %26 = arith.mulf %25, %24 : vector<128x128xf32>
      %27 = arith.mulf %11, %26 : vector<128x128xf32>
      %28 = arith.mulf %27, %14 : vector<128x128xf32>
      %29 = arith.truncf %28 : vector<128x128xf32> to vector<128x128xbf16>
      %c0_15 = arith.constant 0 : index
      %c0_16 = arith.constant 0 : index
      %c0_17 = arith.constant 0 : index
      %30 = vector.load %arg7[%c0_15, %c0_16, %c0_17] : memref<1x128x128xbf16, #tpu.memory_space<vmem>>, vector<1x128x128xbf16>
      %31 = vector.shape_cast %30 : vector<1x128x128xbf16> to vector<128x128xbf16>
      %cst_18 = arith.constant dense<0.000000e+00> : vector<128x128xf32>
      %32 = tpu.matmul %29, %31, %cst_18 {dimension_numbers = #tpu.dot_dimension_numbers<[1], [0], [0], [1], [0, 0, 1, 1], [], []>} : vector<128x128xbf16>, vector<128x128xbf16>, vector<128x128xf32> -> vector<128x128xf32>
      %c0_19 = arith.constant 0 : index
      %c0_20 = arith.constant 0 : index
      %c0_21 = arith.constant 0 : index
      %33 = vector.load %arg8[%c0_19, %c0_20, %c0_21] : memref<1x1x128xf32, #tpu.memory_space<vmem>>, vector<1x1x128xf32>
      %34 = vector.shape_cast %33 : vector<1x1x128xf32> to vector<1x128xf32>
      %35 = vector.broadcast %34 : vector<1x128xf32> to vector<128x128xf32>
      %36 = arith.addf %32, %35 : vector<128x128xf32>
      %c0_22 = arith.constant 0 : index
      %c0_23 = arith.constant 0 : index
      %37 = vector.load %arg4[%c0_22, %c0_23] : memref<128x1xf32, #tpu.memory_space<vmem>>, vector<128x1xf32>
      %38 = vector.broadcast %37 : vector<128x1xf32> to vector<128x128xf32>
      %39 = arith.mulf %36, %38 : vector<128x128xf32>
      %40 = arith.truncf %39 : vector<128x128xf32> to vector<128x128xbf16>
      %c0_24 = arith.constant 0 : index
      %c0_25 = arith.constant 0 : index
      %41 = vector.load %arg9[%c0_24, %c0_25] : memref<128x128xbf16, #tpu.memory_space<vmem>>, vector<128x128xbf16>
      tpu.vector_store %arg9[%c0_24, %c0_25], %40 {strides = array<i32>} : memref<128x128xbf16, #tpu.memory_space<vmem>>, vector<128x128xbf16>,
    } else {
    }
    %c0_i32_1 = arith.constant 0 : i32
    %5 = arith.cmpi eq, %1, %c0_i32_1 : i32
    %6 = arith.extui %5 : i1 to i32
    %c0_i32_2 = arith.constant 0 : i32
    %7 = arith.cmpi ne, %6, %c0_i32_2 : i32
    scf.if %7 {
      %cst = arith.constant 0.000000e+00 : bf16
      %8 = vector.broadcast %cst : bf16 to vector<128x128xbf16>
      %c0 = arith.constant 0 : index
      %c0_3 = arith.constant 0 : index
      %9 = vector.load %arg9[%c0, %c0_3] : memref<128x128xbf16, #tpu.memory_space<vmem>>, vector<128x128xbf16>
      tpu.vector_store %arg9[%c0, %c0_3], %8 {strides = array<i32>} : memref<128x128xbf16, #tpu.memory_space<vmem>>, vector<128x128xbf16>,
    } else {
    }
    return
  }
  func.func @transform_0(%arg0: i32, %arg1: memref<5xi32, #tpu.memory_space<smem>>, %arg2: memref<5xi32, #tpu.memory_space<smem>>) -> (i32, i32) {
    %c0_i32 = arith.constant 0 : i32
    %c0_i32_0 = arith.constant 0 : i32
    return %arg0, %c0_i32 : i32, i32
  }
  func.func @transform_1(%arg0: i32, %arg1: memref<5xi32, #tpu.memory_space<smem>>, %arg2: memref<5xi32, #tpu.memory_space<smem>>) -> (i32, i32) {
    %c0_i32 = arith.constant 0 : i32
    %c0_i32_0 = arith.constant 0 : i32
    return %arg0, %c0_i32 : i32, i32
  }
  func.func @transform_2(%arg0: i32, %arg1: memref<5xi32, #tpu.memory_space<smem>>, %arg2: memref<5xi32, #tpu.memory_space<smem>>) -> (i32, i32, i32) {
    %0 = arith.index_cast %arg0 : i32 to index
    %1 = memref.load %arg1[%0] : memref<5xi32, #tpu.memory_space<smem>>
    %c0_i32 = arith.constant 0 : i32
    %c0_i32_0 = arith.constant 0 : i32
    %c0_i32_1 = arith.constant 0 : i32
    return %1, %c0_i32, %c0_i32_0 : i32, i32, i32
  }
  func.func @transform_3(%arg0: i32, %arg1: memref<5xi32, #tpu.memory_space<smem>>, %arg2: memref<5xi32, #tpu.memory_space<smem>>) -> (i32, i32, i32) {
    %0 = arith.index_cast %arg0 : i32 to index
    %1 = memref.load %arg1[%0] : memref<5xi32, #tpu.memory_space<smem>>
    %c0_i32 = arith.constant 0 : i32
    %c0_i32_0 = arith.constant 0 : i32
    %c0_i32_1 = arith.constant 0 : i32
    return %1, %c0_i32, %c0_i32_0 : i32, i32, i32
  }
  func.func @transform_4(%arg0: i32, %arg1: memref<5xi32, #tpu.memory_space<smem>>, %arg2: memref<5xi32, #tpu.memory_space<smem>>) -> (i32, i32, i32) {
    %0 = arith.index_cast %arg0 : i32 to index
    %1 = memref.load %arg1[%0] : memref<5xi32, #tpu.memory_space<smem>>
    %c0_i32 = arith.constant 0 : i32
    %c0_i32_0 = arith.constant 0 : i32
    %c0_i32_1 = arith.constant 0 : i32
    return %1, %c0_i32, %c0_i32_0 : i32, i32, i32
  }
  func.func @transform_5(%arg0: i32, %arg1: memref<5xi32, #tpu.memory_space<smem>>, %arg2: memref<5xi32, #tpu.memory_space<smem>>) -> (i32, i32, i32) {
    %0 = arith.index_cast %arg0 : i32 to index
    %1 = memref.load %arg1[%0] : memref<5xi32, #tpu.memory_space<smem>>
    %c0_i32 = arith.constant 0 : i32
    %c0_i32_0 = arith.constant 0 : i32
    %c0_i32_1 = arith.constant 0 : i32
    return %1, %c0_i32, %c0_i32_0 : i32, i32, i32
  }
  func.func @transform_6(%arg0: i32, %arg1: memref<5xi32, #tpu.memory_space<smem>>, %arg2: memref<5xi32, #tpu.memory_space<smem>>) -> (i32, i32) {
    %c0_i32 = arith.constant 0 : i32
    %c0_i32_0 = arith.constant 0 : i32
    return %arg0, %c0_i32 : i32, i32
  }
}

</mosaic_0001>

<llo_original>
// kernel: custom-call.3
$region0: #{custom-call.3}
  %s0 = inlined_call_operand.vmem [shape: u32[5], index: 0, kind: output, shape index: {}]

// kernel: smoe_forward.1
$region0: #{smoe_forward.1}
  #allocation0 [shape = 'u32[]', space=smem, size = 0x4, offset = 0x4, fixed_abs, tag = 'smem constant byte address 0x4 - core index']
  #allocation1 [shape = 'u32[144,128]{1,0:T(1,128)}', space=vmem, size = 0x12000, scoped, tag = 'internal scratch']
  #allocation2 [shape = 's32[1]{0}', space=sflag, size = 0x4, scoped, tag = 'scoped memory for smoe_forward.1']
  #allocation3 [shape = 'u8[512]{0}', space=smem, size = 0x200, scoped, tag = 'prefetched SMEM operand 0']
  #allocation4 [shape = 'u8[512]{0}', space=smem, size = 0x200, scoped, tag = 'prefetched SMEM operand 1']
  %s0 = inlined_call_operand.vmem [shape: s32[5], index: 0, kind: input, shape index: {}]
  %s1 = inlined_call_operand.vmem [shape: s32[5], index: 1, kind: input, shape index: {}]
  %s2 = inlined_call_operand.vmem [shape: bf16[640,128], index: 2, kind: input, shape index: {}]
  %s3 = inlined_call_operand.vmem [shape: f32[640,1], index: 3, kind: input, shape index: {}]
  %s4 = inlined_call_operand.vmem [shape: bf16[4,128,128], index: 4, kind: input, shape index: {}]
  %s5 = inlined_call_operand.vmem [shape: bf16[4,128,128], index: 5, kind: input, shape index: {}]
  %s6 = inlined_call_operand.vmem [shape: bf16[4,128,128], index: 6, kind: input, shape index: {}]
  %s7 = inlined_call_operand.vmem [shape: f32[4,1,128], index: 7, kind: input, shape index: {}]
  %s8 = inlined_call_operand.vmem [shape: bf16[640,128], index: 8, kind: output, shape index: {}]
  %s9 = sld [smem:[#allocation0]]
  $region65: #{smoe_forward.1} parent=0
    _
  %s11 = ssub.s32 1, %s9
  %s12 = scalar_select 0, %s11, %s9
  %s13 = sshll.u32 %s0, 4
  %s14 = int_to_ptr.vmem [resolvable:$true] %s13
  %16 = dma.vmem_to_smem %s14, 16, [#allocation3], [#allocation2]
  %s17 = sshll.u32 %s1, 4
  %s18 = int_to_ptr.vmem [resolvable:$true] %s17
  %20 = dma.vmem_to_smem %s18, 16, [#allocation4], [#allocation2]
  %21 = dma.done [#allocation2], 32
  %22 = sfence
  loop: start=0, step=1, limit=7
  $region2: #{smoe_forward.1} parent=0 // loop_pre_header
    _
  $region3: #{smoe_forward.1} parent=0 // loop_header
    %s24 = sphi 0, %s28
    %p25 = scmp.ge.s32.totalorder %s24, 7
    %s34 = sphi 0, %s36
    %s37 = sphi 0, %s34
    %s38 = sphi 0, %s37
    %s54 = sphi 0, %s38
    %s60 = sphi 0, %s62
    %s63 = sphi 0, %s60
    %s64 = sphi 0, %s63
    %s80 = sphi 0, %s64
    %s88 = sphi 0, %s90
    %s91 = sphi 0, %s88
    %s92 = sphi 0, %s91
    %s108 = sphi 0, %s92
    %s116 = sphi 0, %s118
    %s119 = sphi 0, %s116
    %s120 = sphi 0, %s119
    %s136 = sphi 0, %s120
    %s144 = sphi 0, %s146
    %s147 = sphi 0, %s144
    %s148 = sphi 0, %s147
    %s164 = sphi 0, %s148
    %s172 = sphi 0, %s174
    %s175 = sphi 0, %s172
    %s176 = sphi 0, %s175
    %s192 = sphi 0, %s176
    %s198 = sphi 0, %s200
    %s201 = sphi 0, %s198
    %s202 = sphi 0, %s201
    %s218 = sphi 0, %s202
  $region4: #{smoe_forward.1} parent=0 // loop_header_branch
    %27 = sbr.rel (%p25) target = $region8
  $region5: #{smoe_forward.1} parent=0 // loop_body
    %s29 = ssub.s32 %s24, 1
    %s30 = ssub.s32 %s24, 2
    %s31 = sadd.s32 %s24, 1
    %s32 = ssub.s32 %s24, %s31
    %p33 = scmp.eq.s32.totalorder %s32, 0
    %s35 = sadd.s32 %s34, 1
    %s36 = scalar_select %p33, %s34, %s35
    %p39 = pneg %p33
    %p40 = scmp.eq.s32.totalorder %s24, 4
    %p41 = por %p39, %p40
    %p42 = scmp.ne.s32.totalorder %s34, %s37
    %p43 = scmp.eq.s32.totalorder %s24, 0
    %p44 = por %p42, %p43
    %p45 = scmp.ne.s32.totalorder %s34, %s37
    %p46 = scmp.eq.s32.totalorder %s29, 4
    %p47 = por %p45, %p46
    %p48 = scmp.ne.s32.totalorder %s37, %s38
    %p49 = scmp.eq.s32.totalorder %s29, 0
    %p50 = por %p48, %p49
    %p51 = scmp.ne.s32.totalorder %s37, %s38
    %p52 = scmp.eq.s32.totalorder %s30, 4
    %p53 = por %p51, %p52
    %p55 = scmp.ne.s32.totalorder %s38, %s54
    %p56 = scmp.eq.s32.totalorder %s30, 0
    %p57 = por %p55, %p56
    %s58 = ssub.s32 %s24, %s31
    %p59 = scmp.eq.s32.totalorder %s58, 0
    %s61 = sadd.s32 %s60, 1
    %s62 = scalar_select %p59, %s60, %s61
    %p65 = pneg %p59
    %p66 = scmp.eq.s32.totalorder %s24, 4
    %p67 = por %p65, %p66
    %p68 = scmp.ne.s32.totalorder %s60, %s63
    %p69 = scmp.eq.s32.totalorder %s24, 0
    %p70 = por %p68, %p69
    %p71 = scmp.ne.s32.totalorder %s60, %s63
    %p72 = scmp.eq.s32.totalorder %s29, 4
    %p73 = por %p71, %p72
    %p74 = scmp.ne.s32.totalorder %s63, %s64
    %p75 = scmp.eq.s32.totalorder %s29, 0
    %p76 = por %p74, %p75
    %p77 = scmp.ne.s32.totalorder %s63, %s64
    %p78 = scmp.eq.s32.totalorder %s30, 4
    %p79 = por %p77, %p78
    %p81 = scmp.ne.s32.totalorder %s64, %s80
    %p82 = scmp.eq.s32.totalorder %s30, 0
    %p83 = por %p81, %p82
    %s84 = sld [smem:[#allocation3 + %s24]]
    %s85 = sld [smem:[#allocation3 + %s31]]
    %s86 = ssub.s32 %s84, %s85
    %p87 = scmp.eq.s32.totalorder %s86, 0
    %s89 = sadd.s32 %s88, 1
    %s90 = scalar_select %p87, %s88, %s89
    %p93 = pneg %p87
    %p94 = scmp.eq.s32.totalorder %s24, 4
    %p95 = por %p93, %p94
    %p96 = scmp.ne.s32.totalorder %s88, %s91
    %p97 = scmp.eq.s32.totalorder %s24, 0
    %p98 = por %p96, %p97
    %p99 = scmp.ne.s32.totalorder %s88, %s91
    %p100 = scmp.eq.s32.totalorder %s29, 4
    %p101 = por %p99, %p100
    %p102 = scmp.ne.s32.totalorder %s91, %s92
    %p103 = scmp.eq.s32.totalorder %s29, 0
    %p104 = por %p102, %p103
    %p105 = scmp.ne.s32.totalorder %s91, %s92
    %p106 = scmp.eq.s32.totalorder %s30, 4
    %p107 = por %p105, %p106
    %p109 = scmp.ne.s32.totalorder %s92, %s108
    %p110 = scmp.eq.s32.totalorder %s30, 0
    %p111 = por %p109, %p110
    %s112 = sld [smem:[#allocation3 + %s24]]
    %s113 = sld [smem:[#allocation3 + %s31]]
    %s114 = ssub.s32 %s112, %s113
    %p115 = scmp.eq.s32.totalorder %s114, 0
    %s117 = sadd.s32 %s116, 1
    %s118 = scalar_select %p115, %s116, %s117
    %p121 = pneg %p115
    %p122 = scmp.eq.s32.totalorder %s24, 4
    %p123 = por %p121, %p122
    %p124 = scmp.ne.s32.totalorder %s116, %s119
    %p125 = scmp.eq.s32.totalorder %s24, 0
    %p126 = por %p124, %p125
    %p127 = scmp.ne.s32.totalorder %s116, %s119
    %p128 = scmp.eq.s32.totalorder %s29, 4
    %p129 = por %p127, %p128
    %p130 = scmp.ne.s32.totalorder %s119, %s120
    %p131 = scmp.eq.s32.totalorder %s29, 0
    %p132 = por %p130, %p131
    %p133 = scmp.ne.s32.totalorder %s119, %s120
    %p134 = scmp.eq.s32.totalorder %s30, 4
    %p135 = por %p133, %p134
    %p137 = scmp.ne.s32.totalorder %s120, %s136
    %p138 = scmp.eq.s32.totalorder %s30, 0
    %p139 = por %p137, %p138
    %s140 = sld [smem:[#allocation3 + %s24]]
    %s141 = sld [smem:[#allocation3 + %s31]]
    %s142 = ssub.s32 %s140, %s141
    %p143 = scmp.eq.s32.totalorder %s142, 0
    %s145 = sadd.s32 %s144, 1
    %s146 = scalar_select %p143, %s144, %s145
    %p149 = pneg %p143
    %p150 = scmp.eq.s32.totalorder %s24, 4
    %p151 = por %p149, %p150
    %p152 = scmp.ne.s32.totalorder %s144, %s147
    %p153 = scmp.eq.s32.totalorder %s24, 0
    %p154 = por %p152, %p153
    %p155 = scmp.ne.s32.totalorder %s144, %s147
    %p156 = scmp.eq.s32.totalorder %s29, 4
    %p157 = por %p155, %p156
    %p158 = scmp.ne.s32.totalorder %s147, %s148
    %p159 = scmp.eq.s32.totalorder %s29, 0
    %p160 = por %p158, %p159
    %p161 = scmp.ne.s32.totalorder %s147, %s148
    %p162 = scmp.eq.s32.totalorder %s30, 4
    %p163 = por %p161, %p162
    %p165 = scmp.ne.s32.totalorder %s148, %s164
    %p166 = scmp.eq.s32.totalorder %s30, 0
    %p167 = por %p165, %p166
    %s168 = sld [smem:[#allocation3 + %s24]]
    %s169 = sld [smem:[#allocation3 + %s31]]
    %s170 = ssub.s32 %s168, %s169
    %p171 = scmp.eq.s32.totalorder %s170, 0
    %s173 = sadd.s32 %s172, 1
    %s174 = scalar_select %p171, %s172, %s173
    %p177 = pneg %p171
    %p178 = scmp.eq.s32.totalorder %s24, 4
    %p179 = por %p177, %p178
    %p180 = scmp.ne.s32.totalorder %s172, %s175
    %p181 = scmp.eq.s32.totalorder %s24, 0
    %p182 = por %p180, %p181
    %p183 = scmp.ne.s32.totalorder %s172, %s175
    %p184 = scmp.eq.s32.totalorder %s29, 4
    %p185 = por %p183, %p184
    %p186 = scmp.ne.s32.totalorder %s175, %s176
    %p187 = scmp.eq.s32.totalorder %s29, 0
    %p188 = por %p186, %p187
    %p189 = scmp.ne.s32.totalorder %s175, %s176
    %p190 = scmp.eq.s32.totalorder %s30, 4
    %p191 = por %p189, %p190
    %p193 = scmp.ne.s32.totalorder %s176, %s192
    %p194 = scmp.eq.s32.totalorder %s30, 0
    %p195 = por %p193, %p194
    %s196 = ssub.s32 %s24, %s31
    %p197 = scmp.eq.s32.totalorder %s196, 0
    %s199 = sadd.s32 %s198, 1
    %s200 = scalar_select %p197, %s198, %s199
    %p203 = pneg %p197
    %p204 = scmp.eq.s32.totalorder %s24, 4
    %p205 = por %p203, %p204
    %p206 = scmp.ne.s32.totalorder %s198, %s201
    %p207 = scmp.eq.s32.totalorder %s24, 0
    %p208 = por %p206, %p207
    %p209 = scmp.ne.s32.totalorder %s198, %s201
    %p210 = scmp.eq.s32.totalorder %s29, 4
    %p211 = por %p209, %p210
    %p212 = scmp.ne.s32.totalorder %s201, %s202
    %p213 = scmp.eq.s32.totalorder %s29, 0
    %p214 = por %p212, %p213
    %p215 = scmp.ne.s32.totalorder %s201, %s202
    %p216 = scmp.eq.s32.totalorder %s30, 4
    %p217 = por %p215, %p216
    %p219 = scmp.ne.s32.totalorder %s202, %s218
    %p220 = scmp.eq.s32.totalorder %s30, 0
    %p221 = por %p219, %p220
    %p222 = scmp.le.s32.totalorder 1, %s24
    %p223 = scmp.lt.s32.totalorder %s24, 6
    %p224 = pnand %p222, %p223
    %p225 = pneg %p224
    // Predicated region
    $region9: #{smoe_forward.1} parent=5 // pred_check
      _
    $region10: #{smoe_forward.1} parent=5 // pred_check_branch
      %227 = sbr.rel (%p224) target = $region12
    $region11: #{smoe_forward.1} parent=5 // pred_region
      %s228 = ssub.s32 %s24, 1
    $region12: #{smoe_forward.1} parent=5 // pred_fallthru
      _
    %p229 = scmp.lt.s32.totalorder %s24, 5
    // Predicated region
    $region13: #{smoe_forward.1} parent=5 // pred_check
      %p230 = pneg %p229
    $region14: #{smoe_forward.1} parent=5 // pred_check_branch
      %232 = sbr.rel (%p230) target = $region16
    $region15: #{smoe_forward.1} parent=5 // pred_region
      // Predicated region
      $region17: #{smoe_forward.1} parent=15 // pred_check
        %p233 = pneg %p44
      $region18: #{smoe_forward.1} parent=15 // pred_check_branch
        %235 = sbr.rel (%p233) target = $region20
      $region19: #{smoe_forward.1} parent=15 // pred_region
        %s236 = smul.u32 16, %s24
        %p237 = scmp.lt.s32.totalorder %s236, 79
        %s238 = scalar_select %p237, %s236, 79
        %s239 = smul.addr %s238, 4
        %s240 = scalar_lea.vmem %s2, %s239
        %s241 = smul.u32 16, %s24
      $region20: #{smoe_forward.1} parent=15 // pred_fallthru
        _
      // Predicated region
      $region21: #{smoe_forward.1} parent=15 // pred_check
        %p242 = pneg %p70
      $region22: #{smoe_forward.1} parent=15 // pred_check_branch
        %244 = sbr.rel (%p242) target = $region24
      $region23: #{smoe_forward.1} parent=15 // pred_region
        %s245 = smul.u32 16, %s24
        %p246 = scmp.lt.s32.totalorder %s245, 79
        %s247 = scalar_select %p246, %s245, 79
        %s248 = smul.addr %s247, 8
        %s249 = scalar_lea.vmem %s3, %s248
        %s250 = smul.u32 16, %s24
      $region24: #{smoe_forward.1} parent=15 // pred_fallthru
        _
      // Predicated region
      $region25: #{smoe_forward.1} parent=15 // pred_check
        %p251 = pneg %p98
      $region26: #{smoe_forward.1} parent=15 // pred_check_branch
        %253 = sbr.rel (%p251) target = $region28
      $region27: #{smoe_forward.1} parent=15 // pred_region
        %s254 = sld [smem:[#allocation3 + %s24]]
        %p255 = scmp.lt.s32.totalorder %s254, 3
        %s256 = scalar_select %p255, %s254, 3
        %s257 = smul.addr %s256, 16
        %s258 = smul.addr %s257, 4
        %s259 = scalar_lea.vmem %s4, %s258
        %s260 = sld [smem:[#allocation3 + %s24]]
      $region28: #{smoe_forward.1} parent=15 // pred_fallthru
        _
      // Predicated region
      $region29: #{smoe_forward.1} parent=15 // pred_check
        %p261 = pneg %p126
      $region30: #{smoe_forward.1} parent=15 // pred_check_branch
        %263 = sbr.rel (%p261) target = $region32
      $region31: #{smoe_forward.1} parent=15 // pred_region
        %s264 = sld [smem:[#allocation3 + %s24]]
        %p265 = scmp.lt.s32.totalorder %s264, 3
        %s266 = scalar_select %p265, %s264, 3
        %s267 = smul.addr %s266, 16
        %s268 = smul.addr %s267, 4
        %s269 = scalar_lea.vmem %s5, %s268
        %s270 = sld [smem:[#allocation3 + %s24]]
      $region32: #{smoe_forward.1} parent=15 // pred_fallthru
        _
      // Predicated region
      $region33: #{smoe_forward.1} parent=15 // pred_check
        %p271 = pneg %p154
      $region34: #{smoe_forward.1} parent=15 // pred_check_branch
        %273 = sbr.rel (%p271) target = $region36
      $region35: #{smoe_forward.1} parent=15 // pred_region
        %s274 = sld [smem:[#allocation3 + %s24]]
        %p275 = scmp.lt.s32.totalorder %s274, 3
        %s276 = scalar_select %p275, %s274, 3
        %s277 = smul.addr %s276, 16
        %s278 = smul.addr %s277, 4
        %s279 = scalar_lea.vmem %s6, %s278
        %s280 = sld [smem:[#allocation3 + %s24]]
      $region36: #{smoe_forward.1} parent=15 // pred_fallthru
        _
      // Predicated region
      $region37: #{smoe_forward.1} parent=15 // pred_check
        %p281 = pneg %p182
      $region38: #{smoe_forward.1} parent=15 // pred_check_branch
        %283 = sbr.rel (%p281) target = $region40
      $region39: #{smoe_forward.1} parent=15 // pred_region
        %s284 = sld [smem:[#allocation3 + %s24]]
        %p285 = scmp.lt.s32.totalorder %s284, 3
        %s286 = scalar_select %p285, %s284, 3
        %s287 = scalar_lea.vmem %s7, %s286
        %s288 = sld [smem:[#allocation3 + %s24]]
      $region40: #{smoe_forward.1} parent=15 // pred_fallthru
        _
    $region16: #{smoe_forward.1} parent=5 // pred_fallthru
      _
    %p289 = scmp.le.s32.totalorder 1, %s24
    %p290 = scmp.lt.s32.totalorder %s24, 6
    %p291 = pnand %p289, %p290
    %p292 = pneg %p291
    // Predicated region
    $region41: #{smoe_forward.1} parent=5 // pred_check
      _
    $region42: #{smoe_forward.1} parent=5 // pred_check_branch
      %294 = sbr.rel (%p291) target = $region44
    $region43: #{smoe_forward.1} parent=5 // pred_region
      %s295 = ssub.s32 %s24, 1
      %s296 = smul.u32 16, %s29
      %p297 = scmp.lt.s32.totalorder %s296, 79
      %s298 = scalar_select %p297, %s296, 79
      %s299 = smul.addr %s298, 4
      %s300 = scalar_lea.vmem %s2, %s299
      %p301 = pneg %p50
      %p302 = pneg %p47
      %s303 = smul.u32 16, %s29
      %p304 = scmp.lt.s32.totalorder %s303, 79
      %s305 = scalar_select %p304, %s303, 79
      %s306 = smul.addr %s305, 8
      %s307 = scalar_lea.vmem %s3, %s306
      %p308 = pneg %p76
      %p309 = pneg %p73
      %s310 = sld [smem:[#allocation3 + %s29]]
      %p311 = scmp.lt.s32.totalorder %s310, 3
      %s312 = scalar_select %p311, %s310, 3
      %s313 = smul.addr %s312, 16
      %s314 = smul.addr %s313, 4
      %s315 = scalar_lea.vmem %s4, %s314
      %p316 = pneg %p104
      %p317 = pneg %p101
      %s318 = sld [smem:[#allocation3 + %s29]]
      %p319 = scmp.lt.s32.totalorder %s318, 3
      %s320 = scalar_select %p319, %s318, 3
      %s321 = smul.addr %s320, 16
      %s322 = smul.addr %s321, 4
      %s323 = scalar_lea.vmem %s5, %s322
      %p324 = pneg %p132
      %p325 = pneg %p129
      %s326 = sld [smem:[#allocation3 + %s29]]
      %p327 = scmp.lt.s32.totalorder %s326, 3
      %s328 = scalar_select %p327, %s326, 3
      %s329 = smul.addr %s328, 16
      %s330 = smul.addr %s329, 4
      %s331 = scalar_lea.vmem %s6, %s330
      %p332 = pneg %p160
      %p333 = pneg %p157
      %s334 = sld [smem:[#allocation3 + %s29]]
      %p335 = scmp.lt.s32.totalorder %s334, 3
      %s336 = scalar_select %p335, %s334, 3
      %s337 = scalar_lea.vmem %s7, %s336
      %p338 = pneg %p188
      %p339 = pneg %p185
      %p340 = pneg %p214
      %p341 = pneg %p211
      %s342 = smul.u32 16, %s29
      %p343 = scmp.lt.s32.totalorder %s342, 79
      %s344 = scalar_select %p343, %s342, 79
      %s345 = smul.addr %s344, 4
      %s346 = scalar_lea.vmem %s8, %s345
      %s347 = smul.u32 16, %s29
      %p348 = scmp.lt.s32.totalorder %s347, 79
      %s349 = scalar_select %p348, %s347, 79
      %s350 = smul.addr %s349, 4
      %s351 = scalar_lea.vmem %s2, %s350
      %s352 = smul.u32 16, %s29
      %s353 = smul.u32 16, %s29
      %p354 = scmp.lt.s32.totalorder %s353, 79
      %s355 = scalar_select %p354, %s353, 79
      %s356 = smul.addr %s355, 8
      %s357 = scalar_lea.vmem %s3, %s356
      %s358 = smul.u32 16, %s29
      %s359 = sld [smem:[#allocation3 + %s29]]
      %p360 = scmp.lt.s32.totalorder %s359, 3
      %s361 = scalar_select %p360, %s359, 3
      %s362 = smul.addr %s361, 16
      %s363 = smul.addr %s362, 4
      %s364 = scalar_lea.vmem %s4, %s363
      %s365 = sld [smem:[#allocation3 + %s29]]
      %s366 = sld [smem:[#allocation3 + %s29]]
      %p367 = scmp.lt.s32.totalorder %s366, 3
      %s368 = scalar_select %p367, %s366, 3
      %s369 = smul.addr %s368, 16
      %s370 = smul.addr %s369, 4
      %s371 = scalar_lea.vmem %s5, %s370
      %s372 = sld [smem:[#allocation3 + %s29]]
      %s373 = sld [smem:[#allocation3 + %s29]]
      %p374 = scmp.lt.s32.totalorder %s373, 3
      %s375 = scalar_select %p374, %s373, 3
      %s376 = smul.addr %s375, 16
      %s377 = smul.addr %s376, 4
      %s378 = scalar_lea.vmem %s6, %s377
      %s379 = sld [smem:[#allocation3 + %s29]]
      %s380 = sld [smem:[#allocation3 + %s29]]
      %p381 = scmp.lt.s32.totalorder %s380, 3
      %s382 = scalar_select %p381, %s380, 3
      %s383 = scalar_lea.vmem %s7, %s382
      %s384 = sld [smem:[#allocation3 + %s29]]
      %s385 = smul.u32 16, %s29
      %p386 = scmp.lt.s32.totalorder %s385, 79
      %s387 = scalar_select %p386, %s385, 79
      %s388 = smul.addr %s387, 4
      %s389 = scalar_lea.vmem %s8, %s388
      %s390 = smul.u32 16, %s29
      %s392 = sld [smem:[#allocation4 + %s29]]
      %p393 = scmp.gt.s32.totalorder %s392, 0
      // Predicated region
      $region45: #{smoe_forward.1} parent=43 // pred_check
        %p394 = pneg %p393
      $region46: #{smoe_forward.1} parent=43 // pred_check_branch
        %396 = sbr.rel (%p394) target = $region48
      $region47: #{smoe_forward.1} parent=43 // pred_region
        %v397 = vld [vmem:[%s351] sm:$0xf]
        %v398 = vld [vmem:[%s351 + $0x4] sm:$0xf]
        %v399 = vld [vmem:[%s351 + $0x8] sm:$0xf]
        %v400 = vld [vmem:[%s351 + $0xc] sm:$0xf]
        %v401 = vld [vmem:[%s351 + $0x10] sm:$0xf]
        %v402 = vld [vmem:[%s351 + $0x14] sm:$0xf]
        %v403 = vld [vmem:[%s351 + $0x18] sm:$0xf]
        %v404 = vld [vmem:[%s351 + $0x1c] sm:$0xf]
        %v405 = vld [vmem:[%s351 + $0x20] sm:$0xf]
        %v406 = vld [vmem:[%s351 + $0x24] sm:$0xf]
        %v407 = vld [vmem:[%s351 + $0x28] sm:$0xf]
        %v408 = vld [vmem:[%s351 + $0x2c] sm:$0xf]
        %v409 = vld [vmem:[%s351 + $0x30] sm:$0xf]
        %v410 = vld [vmem:[%s351 + $0x34] sm:$0xf]
        %v411 = vld [vmem:[%s351 + $0x38] sm:$0xf]
        %v412 = vld [vmem:[%s351 + $0x3c] sm:$0xf]
        %v413 = vld [vmem:[%s364] sm:$0xf]
        %v414 = vld [vmem:[%s364 + $0x4] sm:$0xf]
        %v415 = vld [vmem:[%s364 + $0x8] sm:$0xf]
        %v416 = vld [vmem:[%s364 + $0xc] sm:$0xf]
        %v417 = vld [vmem:[%s364 + $0x10] sm:$0xf]
        %v418 = vld [vmem:[%s364 + $0x14] sm:$0xf]
        %v419 = vld [vmem:[%s364 + $0x18] sm:$0xf]
        %v420 = vld [vmem:[%s364 + $0x1c] sm:$0xf]
        %v421 = vld [vmem:[%s364 + $0x20] sm:$0xf]
        %v422 = vld [vmem:[%s364 + $0x24] sm:$0xf]
        %v423 = vld [vmem:[%s364 + $0x28] sm:$0xf]
        %v424 = vld [vmem:[%s364 + $0x2c] sm:$0xf]
        %v425 = vld [vmem:[%s364 + $0x30] sm:$0xf]
        %v426 = vld [vmem:[%s364 + $0x34] sm:$0xf]
        %v427 = vld [vmem:[%s364 + $0x38] sm:$0xf]
        %v428 = vld [vmem:[%s364 + $0x3c] sm:$0xf]
        %v445 = vunpack.c.l.b16 %v397
        %v446 = vunpack.c.l.b16 %v398
        %v447 = vunpack.c.l.b16 %v399
        %v448 = vunpack.c.l.b16 %v400
        %v449 = vunpack.c.l.b16 %v401
        %v450 = vunpack.c.l.b16 %v402
        %v451 = vunpack.c.l.b16 %v403
        %v452 = vunpack.c.l.b16 %v404
        %v453 = vunpack.c.l.b16 %v405
        %v454 = vunpack.c.l.b16 %v406
        %v455 = vunpack.c.l.b16 %v407
        %v456 = vunpack.c.l.b16 %v408
        %v457 = vunpack.c.l.b16 %v409
        %v458 = vunpack.c.l.b16 %v410
        %v459 = vunpack.c.l.b16 %v411
        %v460 = vunpack.c.l.b16 %v412
        %v461 = vpack.c.b16 %v446, %v445
        %v462 = vpack.c.b16 %v448, %v447
        %v463 = vpack.c.b16 %v450, %v449
        %v464 = vpack.c.b16 %v452, %v451
        %v465 = vpack.c.b16 %v454, %v453
        %v466 = vpack.c.b16 %v456, %v455
        %v467 = vpack.c.b16 %v458, %v457
        %v468 = vpack.c.b16 %v460, %v459
        %v493 = vunpack.c.l.b16 %v413
        %v494 = vunpack.c.l.b16 %v414
        %v495 = vunpack.c.l.b16 %v415
        %v496 = vunpack.c.l.b16 %v416
        %v497 = vunpack.c.l.b16 %v417
        %v498 = vunpack.c.l.b16 %v418
        %v499 = vunpack.c.l.b16 %v419
        %v500 = vunpack.c.l.b16 %v420
        %v501 = vunpack.c.l.b16 %v421
        %v502 = vunpack.c.l.b16 %v422
        %v503 = vunpack.c.l.b16 %v423
        %v504 = vunpack.c.l.b16 %v424
        %v505 = vunpack.c.l.b16 %v425
        %v506 = vunpack.c.l.b16 %v426
        %v507 = vunpack.c.l.b16 %v427
        %v508 = vunpack.c.l.b16 %v428
        %v509 = vpack.c.b16 %v494, %v493
        %v510 = vpack.c.b16 %v496, %v495
        %v511 = vpack.c.b16 %v498, %v497
        %v512 = vpack.c.b16 %v500, %v499
        %v513 = vpack.c.b16 %v502, %v501
        %v514 = vpack.c.b16 %v504, %v503
        %v515 = vpack.c.b16 %v506, %v505
        %v516 = vpack.c.b16 %v508, %v507
        %525 = vmatprep.subr.bf16.mxu0 0
        %526 = vmatpush1.bf16.msra.mxu0 %v516
        %527 = vmatprep.subr.bf16.mxu0 0
        %528 = vmatpush1.bf16.msra.mxu0 %v515
        %529 = vmatprep.subr.bf16.mxu0 0
        %530 = vmatpush1.bf16.msra.mxu0 %v514
        %531 = vmatprep.subr.bf16.mxu0 0
        %532 = vmatpush1.bf16.msra.mxu0 %v513
        %533 = vmatprep.subr.bf16.mxu0 0
        %534 = vmatpush1.bf16.msra.mxu0 %v512
        %535 = vmatprep.subr.bf16.mxu0 0
        %536 = vmatpush1.bf16.msra.mxu0 %v511
        %537 = vmatprep.subr.bf16.mxu0 0
        %538 = vmatpush1.bf16.msra.mxu0 %v510
        %539 = vmatprep.subr.bf16.mxu0 0
        %540 = vmatpush1.bf16.msra.mxu0 %v509
        %541 = vmatprep.subr.bf16.mxu0 0
        %542 = vmatpush2.bf16.msra.mxu0 0
        %543 = vmatprep.subr.bf16.mxu0 0
        %544 = vmatpush2.bf16.msra.mxu0 0
        %545 = vmatprep.subr.bf16.mxu0 0
        %546 = vmatpush2.bf16.msra.mxu0 0
        %547 = vmatprep.subr.bf16.mxu0 0
        %548 = vmatpush2.bf16.msra.mxu0 0
        %549 = vmatprep.subr.bf16.mxu0 0
        %550 = vmatpush2.bf16.msra.mxu0 0
        %551 = vmatprep.subr.bf16.mxu0 0
        %552 = vmatpush2.bf16.msra.mxu0 0
        %553 = vmatprep.subr.bf16.mxu0 0
        %554 = vmatpush2.bf16.msra.mxu0 0
        %555 = vmatprep.subr.bf16.mxu0 0
        %556 = vmatpush2.bf16.msra.mxu0 0
        %557 = vmatprep.mubr.bf16.mxu0 0
        %558 = vmatmul.mubr.bf16.gmra.mxu0 %v461
        %v559 = vpop.f32.mrf.mxu0
        %v560 = vadd.f32 0.0, %v559
        %v561 = vpop.f32.mrf.mxu0
        %v562 = vpop.f32.mrf.mxu0
        %v563 = vadd.f32 0.0, %v562
        %v564 = vpop.f32.mrf.mxu0
        %565 = vmatprep.mubr.bf16.mxu0 0
        %566 = vmatmul.mubr.bf16.gmra.mxu0 %v462
        %v567 = vpop.f32.mrf.mxu0
        %v568 = vadd.f32 0.0, %v567
        %v569 = vpop.f32.mrf.mxu0
        %v570 = vpop.f32.mrf.mxu0
        %v571 = vadd.f32 0.0, %v570
        %v572 = vpop.f32.mrf.mxu0
        %573 = vmatprep.mubr.bf16.mxu0 0
        %574 = vmatmul.mubr.bf16.gmra.mxu0 %v463
        %v575 = vpop.f32.mrf.mxu0
        %v576 = vadd.f32 0.0, %v575
        %v577 = vpop.f32.mrf.mxu0
        %v578 = vpop.f32.mrf.mxu0
        %v579 = vadd.f32 0.0, %v578
        %v580 = vpop.f32.mrf.mxu0
        %581 = vmatprep.mubr.bf16.mxu0 0
        %582 = vmatmul.mubr.bf16.gmra.mxu0 %v464
        %v583 = vpop.f32.mrf.mxu0
        %v584 = vadd.f32 0.0, %v583
        %v585 = vpop.f32.mrf.mxu0
        %v586 = vpop.f32.mrf.mxu0
        %v587 = vadd.f32 0.0, %v586
        %v588 = vpop.f32.mrf.mxu0
        %589 = vmatprep.mubr.bf16.mxu0 0
        %590 = vmatmul.mubr.bf16.gmra.mxu0 %v465
        %v591 = vpop.f32.mrf.mxu0
        %v592 = vadd.f32 0.0, %v591
        %v593 = vpop.f32.mrf.mxu0
        %v594 = vpop.f32.mrf.mxu0
        %v595 = vadd.f32 0.0, %v594
        %v596 = vpop.f32.mrf.mxu0
        %597 = vmatprep.mubr.bf16.mxu0 0
        %598 = vmatmul.mubr.bf16.gmra.mxu0 %v466
        %v599 = vpop.f32.mrf.mxu0
        %v600 = vadd.f32 0.0, %v599
        %v601 = vpop.f32.mrf.mxu0
        %v602 = vpop.f32.mrf.mxu0
        %v603 = vadd.f32 0.0, %v602
        %v604 = vpop.f32.mrf.mxu0
        %605 = vmatprep.mubr.bf16.mxu0 0
        %606 = vmatmul.mubr.bf16.gmra.mxu0 %v467
        %v607 = vpop.f32.mrf.mxu0
        %v608 = vadd.f32 0.0, %v607
        %v609 = vpop.f32.mrf.mxu0
        %v610 = vpop.f32.mrf.mxu0
        %v611 = vadd.f32 0.0, %v610
        %v612 = vpop.f32.mrf.mxu0
        %613 = vmatprep.mubr.bf16.mxu0 0
        %614 = vmatmul.mubr.bf16.gmra.mxu0 %v468
        %v615 = vpop.f32.mrf.mxu0
        %v616 = vadd.f32 0.0, %v615
        %v617 = vpop.f32.mrf.mxu0
        %v618 = vpop.f32.mrf.mxu0
        %v619 = vadd.f32 0.0, %v618
        %v620 = vpop.f32.mrf.mxu0
        %621 = vdwg.mxu0
        %v622 = vld [vmem:[%s371] sm:$0xf]
        %v623 = vld [vmem:[%s371 + $0x4] sm:$0xf]
        %v624 = vld [vmem:[%s371 + $0x8] sm:$0xf]
        %v625 = vld [vmem:[%s371 + $0xc] sm:$0xf]
        %v626 = vld [vmem:[%s371 + $0x10] sm:$0xf]
        %v627 = vld [vmem:[%s371 + $0x14] sm:$0xf]
        %v628 = vld [vmem:[%s371 + $0x18] sm:$0xf]
        %v629 = vld [vmem:[%s371 + $0x1c] sm:$0xf]
        %v630 = vld [vmem:[%s371 + $0x20] sm:$0xf]
        %v631 = vld [vmem:[%s371 + $0x24] sm:$0xf]
        %v632 = vld [vmem:[%s371 + $0x28] sm:$0xf]
        %v633 = vld [vmem:[%s371 + $0x2c] sm:$0xf]
        %v634 = vld [vmem:[%s371 + $0x30] sm:$0xf]
        %v635 = vld [vmem:[%s371 + $0x34] sm:$0xf]
        %v636 = vld [vmem:[%s371 + $0x38] sm:$0xf]
        %v637 = vld [vmem:[%s371 + $0x3c] sm:$0xf]
        %v654 = vunpack.c.l.b16 %v622
        %v655 = vunpack.c.l.b16 %v623
        %v656 = vunpack.c.l.b16 %v624
        %v657 = vunpack.c.l.b16 %v625
        %v658 = vunpack.c.l.b16 %v626
        %v659 = vunpack.c.l.b16 %v627
        %v660 = vunpack.c.l.b16 %v628
        %v661 = vunpack.c.l.b16 %v629
        %v662 = vunpack.c.l.b16 %v630
        %v663 = vunpack.c.l.b16 %v631
        %v664 = vunpack.c.l.b16 %v632
        %v665 = vunpack.c.l.b16 %v633
        %v666 = vunpack.c.l.b16 %v634
        %v667 = vunpack.c.l.b16 %v635
        %v668 = vunpack.c.l.b16 %v636
        %v669 = vunpack.c.l.b16 %v637
        %v670 = vpack.c.b16 %v655, %v654
        %v671 = vpack.c.b16 %v657, %v656
        %v672 = vpack.c.b16 %v659, %v658
        %v673 = vpack.c.b16 %v661, %v660
        %v674 = vpack.c.b16 %v663, %v662
        %v675 = vpack.c.b16 %v665, %v664
        %v676 = vpack.c.b16 %v667, %v666
        %v677 = vpack.c.b16 %v669, %v668
        %686 = vmatprep.subr.bf16.mxu0 0
        %687 = vmatpush1.bf16.msra.mxu0 %v677
        %688 = vmatprep.subr.bf16.mxu0 0
        %689 = vmatpush1.bf16.msra.mxu0 %v676
        %690 = vmatprep.subr.bf16.mxu0 0
        %691 = vmatpush1.bf16.msra.mxu0 %v675
        %692 = vmatprep.subr.bf16.mxu0 0
        %693 = vmatpush1.bf16.msra.mxu0 %v674
        %694 = vmatprep.subr.bf16.mxu0 0
        %695 = vmatpush1.bf16.msra.mxu0 %v673
        %696 = vmatprep.subr.bf16.mxu0 0
        %697 = vmatpush1.bf16.msra.mxu0 %v672
        %698 = vmatprep.subr.bf16.mxu0 0
        %699 = vmatpush1.bf16.msra.mxu0 %v671
        %700 = vmatprep.subr.bf16.mxu0 0
        %701 = vmatpush1.bf16.msra.mxu0 %v670
        %702 = vmatprep.subr.bf16.mxu0 0
        %703 = vmatpush2.bf16.msra.mxu0 0
        %704 = vmatprep.subr.bf16.mxu0 0
        %705 = vmatpush2.bf16.msra.mxu0 0
        %706 = vmatprep.subr.bf16.mxu0 0
        %707 = vmatpush2.bf16.msra.mxu0 0
        %708 = vmatprep.subr.bf16.mxu0 0
        %709 = vmatpush2.bf16.msra.mxu0 0
        %710 = vmatprep.subr.bf16.mxu0 0
        %711 = vmatpush2.bf16.msra.mxu0 0
        %712 = vmatprep.subr.bf16.mxu0 0
        %713 = vmatpush2.bf16.msra.mxu0 0
        %714 = vmatprep.subr.bf16.mxu0 0
        %715 = vmatpush2.bf16.msra.mxu0 0
        %716 = vmatprep.subr.bf16.mxu0 0
        %717 = vmatpush2.bf16.msra.mxu0 0
        %718 = vmatprep.mubr.bf16.mxu0 0
        %719 = vmatmul.mubr.bf16.gmra.mxu0 %v461
        %v720 = vpop.f32.mrf.mxu0
        %v721 = vadd.f32 0.0, %v720
        %v722 = vpop.f32.mrf.mxu0
        %v723 = vpop.f32.mrf.mxu0
        %v724 = vadd.f32 0.0, %v723
        %v725 = vpop.f32.mrf.mxu0
        %726 = vmatprep.mubr.bf16.mxu0 0
        %727 = vmatmul.mubr.bf16.gmra.mxu0 %v462
        %v728 = vpop.f32.mrf.mxu0
        %v729 = vadd.f32 0.0, %v728
        %v730 = vpop.f32.mrf.mxu0
        %v731 = vpop.f32.mrf.mxu0
        %v732 = vadd.f32 0.0, %v731
        %v733 = vpop.f32.mrf.mxu0
        %734 = vmatprep.mubr.bf16.mxu0 0
        %735 = vmatmul.mubr.bf16.gmra.mxu0 %v463
        %v736 = vpop.f32.mrf.mxu0
        %v737 = vadd.f32 0.0, %v736
        %v738 = vpop.f32.mrf.mxu0
        %v739 = vpop.f32.mrf.mxu0
        %v740 = vadd.f32 0.0, %v739
        %v741 = vpop.f32.mrf.mxu0
        %742 = vmatprep.mubr.bf16.mxu0 0
        %743 = vmatmul.mubr.bf16.gmra.mxu0 %v464
        %v744 = vpop.f32.mrf.mxu0
        %v745 = vadd.f32 0.0, %v744
        %v746 = vpop.f32.mrf.mxu0
        %v747 = vpop.f32.mrf.mxu0
        %v748 = vadd.f32 0.0, %v747
        %v749 = vpop.f32.mrf.mxu0
        %750 = vmatprep.mubr.bf16.mxu0 0
        %751 = vmatmul.mubr.bf16.gmra.mxu0 %v465
        %v752 = vpop.f32.mrf.mxu0
        %v753 = vadd.f32 0.0, %v752
        %v754 = vpop.f32.mrf.mxu0
        %v755 = vpop.f32.mrf.mxu0
        %v756 = vadd.f32 0.0, %v755
        %v757 = vpop.f32.mrf.mxu0
        %758 = vmatprep.mubr.bf16.mxu0 0
        %759 = vmatmul.mubr.bf16.gmra.mxu0 %v466
        %v760 = vpop.f32.mrf.mxu0
        %v761 = vadd.f32 0.0, %v760
        %v762 = vpop.f32.mrf.mxu0
        %v763 = vpop.f32.mrf.mxu0
        %v764 = vadd.f32 0.0, %v763
        %v765 = vpop.f32.mrf.mxu0
        %766 = vmatprep.mubr.bf16.mxu0 0
        %767 = vmatmul.mubr.bf16.gmra.mxu0 %v467
        %v768 = vpop.f32.mrf.mxu0
        %v769 = vadd.f32 0.0, %v768
        %v770 = vpop.f32.mrf.mxu0
        %v771 = vpop.f32.mrf.mxu0
        %v772 = vadd.f32 0.0, %v771
        %v773 = vpop.f32.mrf.mxu0
        %774 = vmatprep.mubr.bf16.mxu0 0
        %775 = vmatmul.mubr.bf16.gmra.mxu0 %v468
        %v776 = vpop.f32.mrf.mxu0
        %v777 = vadd.f32 0.0, %v776
        %v778 = vpop.f32.mrf.mxu0
        %v779 = vpop.f32.mrf.mxu0
        %v780 = vadd.f32 0.0, %v779
        %v781 = vpop.f32.mrf.mxu0
        %782 = vdwg.mxu0
        %v783 = vmul.f32 %v560, %v560
        %v784 = vmul.f32 %v563, %v563
        %v785 = vmul.f32 %v568, %v568
        %v786 = vmul.f32 %v571, %v571
        %v787 = vmul.f32 %v576, %v576
        %v788 = vmul.f32 %v579, %v579
        %v789 = vmul.f32 %v584, %v584
        %v790 = vmul.f32 %v587, %v587
        %v791 = vmul.f32 %v592, %v592
        %v792 = vmul.f32 %v595, %v595
        %v793 = vmul.f32 %v600, %v600
        %v794 = vmul.f32 %v603, %v603
        %v795 = vmul.f32 %v608, %v608
        %v796 = vmul.f32 %v611, %v611
        %v797 = vmul.f32 %v616, %v616
        %v798 = vmul.f32 %v619, %v619
        %v799 = vmul.f32 %v560, %v783
        %v800 = vmul.f32 %v563, %v784
        %v801 = vmul.f32 %v568, %v785
        %v802 = vmul.f32 %v571, %v786
        %v803 = vmul.f32 %v576, %v787
        %v804 = vmul.f32 %v579, %v788
        %v805 = vmul.f32 %v584, %v789
        %v806 = vmul.f32 %v587, %v790
        %v807 = vmul.f32 %v592, %v791
        %v808 = vmul.f32 %v595, %v792
        %v809 = vmul.f32 %v600, %v793
        %v810 = vmul.f32 %v603, %v794
        %v811 = vmul.f32 %v608, %v795
        %v812 = vmul.f32 %v611, %v796
        %v813 = vmul.f32 %v616, %v797
        %v814 = vmul.f32 %v619, %v798
        %v815 = vmul.f32 %v799, 0.044715
        %v816 = vmul.f32 %v800, 0.044715
        %v817 = vmul.f32 %v801, 0.044715
        %v818 = vmul.f32 %v802, 0.044715
        %v819 = vmul.f32 %v803, 0.044715
        %v820 = vmul.f32 %v804, 0.044715
        %v821 = vmul.f32 %v805, 0.044715
        %v822 = vmul.f32 %v806, 0.044715
        %v823 = vmul.f32 %v807, 0.044715
        %v824 = vmul.f32 %v808, 0.044715
        %v825 = vmul.f32 %v809, 0.044715
        %v826 = vmul.f32 %v810, 0.044715
        %v827 = vmul.f32 %v811, 0.044715
        %v828 = vmul.f32 %v812, 0.044715
        %v829 = vmul.f32 %v813, 0.044715
        %v830 = vmul.f32 %v814, 0.044715
        %v831 = vadd.f32 %v560, %v815
        %v832 = vadd.f32 %v563, %v816
        %v833 = vadd.f32 %v568, %v817
        %v834 = vadd.f32 %v571, %v818
        %v835 = vadd.f32 %v576, %v819
        %v836 = vadd.f32 %v579, %v820
        %v837 = vadd.f32 %v584, %v821
        %v838 = vadd.f32 %v587, %v822
        %v839 = vadd.f32 %v592, %v823
        %v840 = vadd.f32 %v595, %v824
        %v841 = vadd.f32 %v600, %v825
        %v842 = vadd.f32 %v603, %v826
        %v843 = vadd.f32 %v608, %v827
        %v844 = vadd.f32 %v611, %v828
        %v845 = vadd.f32 %v616, %v829
        %v846 = vadd.f32 %v619, %v830
        %v847 = vmul.f32 %v831, 0.7978846
        %v848 = vmul.f32 %v832, 0.7978846
        %v849 = vmul.f32 %v833, 0.7978846
        %v850 = vmul.f32 %v834, 0.7978846
        %v851 = vmul.f32 %v835, 0.7978846
        %v852 = vmul.f32 %v836, 0.7978846
        %v853 = vmul.f32 %v837, 0.7978846
        %v854 = vmul.f32 %v838, 0.7978846
        %v855 = vmul.f32 %v839, 0.7978846
        %v856 = vmul.f32 %v840, 0.7978846
        %v857 = vmul.f32 %v841, 0.7978846
        %v858 = vmul.f32 %v842, 0.7978846
        %v859 = vmul.f32 %v843, 0.7978846
        %v860 = vmul.f32 %v844, 0.7978846
        %v861 = vmul.f32 %v845, 0.7978846
        %v862 = vmul.f32 %v846, 0.7978846
        %v863 = vtanh.pop %v847
        %v864 = vtanh.pop %v848
        %v865 = vtanh.pop %v849
        %v866 = vtanh.pop %v850
        %v867 = vtanh.pop %v851
        %v868 = vtanh.pop %v852
        %v869 = vtanh.pop %v853
        %v870 = vtanh.pop %v854
        %v871 = vtanh.pop %v855
        %v872 = vtanh.pop %v856
        %v873 = vtanh.pop %v857
        %v874 = vtanh.pop %v858
        %v875 = vtanh.pop %v859
        %v876 = vtanh.pop %v860
        %v877 = vtanh.pop %v861
        %v878 = vtanh.pop %v862
        %v879 = vadd.f32 %v863, 1.0
        %v880 = vadd.f32 %v864, 1.0
        %v881 = vadd.f32 %v865, 1.0
        %v882 = vadd.f32 %v866, 1.0
        %v883 = vadd.f32 %v867, 1.0
        %v884 = vadd.f32 %v868, 1.0
        %v885 = vadd.f32 %v869, 1.0
        %v886 = vadd.f32 %v870, 1.0
        %v887 = vadd.f32 %v871, 1.0
        %v888 = vadd.f32 %v872, 1.0
        %v889 = vadd.f32 %v873, 1.0
        %v890 = vadd.f32 %v874, 1.0
        %v891 = vadd.f32 %v875, 1.0
        %v892 = vadd.f32 %v876, 1.0
        %v893 = vadd.f32 %v877, 1.0
        %v894 = vadd.f32 %v878, 1.0
        %v895 = vmul.f32 %v879, 0.5
        %v896 = vmul.f32 %v880, 0.5
        %v897 = vmul.f32 %v881, 0.5
        %v898 = vmul.f32 %v882, 0.5
        %v899 = vmul.f32 %v883, 0.5
        %v900 = vmul.f32 %v884, 0.5
        %v901 = vmul.f32 %v885, 0.5
        %v902 = vmul.f32 %v886, 0.5
        %v903 = vmul.f32 %v887, 0.5
        %v904 = vmul.f32 %v888, 0.5
        %v905 = vmul.f32 %v889, 0.5
        %v906 = vmul.f32 %v890, 0.5
        %v907 = vmul.f32 %v891, 0.5
        %v908 = vmul.f32 %v892, 0.5
        %v909 = vmul.f32 %v893, 0.5
        %v910 = vmul.f32 %v894, 0.5
        %v911 = vmul.f32 %v560, %v895
        %v912 = vmul.f32 %v563, %v896
        %v913 = vmul.f32 %v568, %v897
        %v914 = vmul.f32 %v571, %v898
        %v915 = vmul.f32 %v576, %v899
        %v916 = vmul.f32 %v579, %v900
        %v917 = vmul.f32 %v584, %v901
        %v918 = vmul.f32 %v587, %v902
        %v919 = vmul.f32 %v592, %v903
        %v920 = vmul.f32 %v595, %v904
        %v921 = vmul.f32 %v600, %v905
        %v922 = vmul.f32 %v603, %v906
        %v923 = vmul.f32 %v608, %v907
        %v924 = vmul.f32 %v611, %v908
        %v925 = vmul.f32 %v616, %v909
        %v926 = vmul.f32 %v619, %v910
        %v927 = vmul.f32 %v911, %v721
        %v928 = vmul.f32 %v912, %v724
        %v929 = vmul.f32 %v913, %v729
        %v930 = vmul.f32 %v914, %v732
        %v931 = vmul.f32 %v915, %v737
        %v932 = vmul.f32 %v916, %v740
        %v933 = vmul.f32 %v917, %v745
        %v934 = vmul.f32 %v918, %v748
        %v935 = vmul.f32 %v919, %v753
        %v936 = vmul.f32 %v920, %v756
        %v937 = vmul.f32 %v921, %v761
        %v938 = vmul.f32 %v922, %v764
        %v939 = vmul.f32 %v923, %v769
        %v940 = vmul.f32 %v924, %v772
        %v941 = vmul.f32 %v925, %v777
        %v942 = vmul.f32 %v926, %v780
        %v943 = vpack.c.bf16 %v928, %v927
        %v944 = vpack.c.bf16 %v930, %v929
        %v945 = vpack.c.bf16 %v932, %v931
        %v946 = vpack.c.bf16 %v934, %v933
        %v947 = vpack.c.bf16 %v936, %v935
        %v948 = vpack.c.bf16 %v938, %v937
        %v949 = vpack.c.bf16 %v940, %v939
        %v950 = vpack.c.bf16 %v942, %v941
        %v951 = vld [vmem:[%s378] sm:$0xf]
        %v952 = vld [vmem:[%s378 + $0x4] sm:$0xf]
        %v953 = vld [vmem:[%s378 + $0x8] sm:$0xf]
        %v954 = vld [vmem:[%s378 + $0xc] sm:$0xf]
        %v955 = vld [vmem:[%s378 + $0x10] sm:$0xf]
        %v956 = vld [vmem:[%s378 + $0x14] sm:$0xf]
        %v957 = vld [vmem:[%s378 + $0x18] sm:$0xf]
        %v958 = vld [vmem:[%s378 + $0x1c] sm:$0xf]
        %v959 = vld [vmem:[%s378 + $0x20] sm:$0xf]
        %v960 = vld [vmem:[%s378 + $0x24] sm:$0xf]
        %v961 = vld [vmem:[%s378 + $0x28] sm:$0xf]
        %v962 = vld [vmem:[%s378 + $0x2c] sm:$0xf]
        %v963 = vld [vmem:[%s378 + $0x30] sm:$0xf]
        %v964 = vld [vmem:[%s378 + $0x34] sm:$0xf]
        %v965 = vld [vmem:[%s378 + $0x38] sm:$0xf]
        %v966 = vld [vmem:[%s378 + $0x3c] sm:$0xf]
        %v967 = vld [vmem:[%s383] sm:$0x1]
        %v969 = vlaneseq
        %v970 = vshrl.u32 %v969, 7
        %v971 = vsub.s32 0, %v970
        %v972 = vrot.slane %v967, %v971
        %v990 = vunpack.c.l.b16 %v951
        %v991 = vunpack.c.l.b16 %v952
        %v992 = vunpack.c.l.b16 %v953
        %v993 = vunpack.c.l.b16 %v954
        %v994 = vunpack.c.l.b16 %v955
        %v995 = vunpack.c.l.b16 %v956
        %v996 = vunpack.c.l.b16 %v957
        %v997 = vunpack.c.l.b16 %v958
        %v998 = vunpack.c.l.b16 %v959
        %v999 = vunpack.c.l.b16 %v960
        %v1000 = vunpack.c.l.b16 %v961
        %v1001 = vunpack.c.l.b16 %v962
        %v1002 = vunpack.c.l.b16 %v963
        %v1003 = vunpack.c.l.b16 %v964
        %v1004 = vunpack.c.l.b16 %v965
        %v1005 = vunpack.c.l.b16 %v966
        %v1006 = vpack.c.b16 %v991, %v990
        %v1007 = vpack.c.b16 %v993, %v992
        %v1008 = vpack.c.b16 %v995, %v994
        %v1009 = vpack.c.b16 %v997, %v996
        %v1010 = vpack.c.b16 %v999, %v998
        %v1011 = vpack.c.b16 %v1001, %v1000
        %v1012 = vpack.c.b16 %v1003, %v1002
        %v1013 = vpack.c.b16 %v1005, %v1004
        %1022 = vmatprep.subr.bf16.mxu0 0
        %1023 = vmatpush1.bf16.msra.mxu0 %v1013
        %1024 = vmatprep.subr.bf16.mxu0 0
        %1025 = vmatpush1.bf16.msra.mxu0 %v1012
        %1026 = vmatprep.subr.bf16.mxu0 0
        %1027 = vmatpush1.bf16.msra.mxu0 %v1011
        %1028 = vmatprep.subr.bf16.mxu0 0
        %1029 = vmatpush1.bf16.msra.mxu0 %v1010
        %1030 = vmatprep.subr.bf16.mxu0 0
        %1031 = vmatpush1.bf16.msra.mxu0 %v1009
        %1032 = vmatprep.subr.bf16.mxu0 0
        %1033 = vmatpush1.bf16.msra.mxu0 %v1008
        %1034 = vmatprep.subr.bf16.mxu0 0
        %1035 = vmatpush1.bf16.msra.mxu0 %v1007
        %1036 = vmatprep.subr.bf16.mxu0 0
        %1037 = vmatpush1.bf16.msra.mxu0 %v1006
        %1038 = vmatprep.subr.bf16.mxu0 0
        %1039 = vmatpush2.bf16.msra.mxu0 0
        %1040 = vmatprep.subr.bf16.mxu0 0
        %1041 = vmatpush2.bf16.msra.mxu0 0
        %1042 = vmatprep.subr.bf16.mxu0 0
        %1043 = vmatpush2.bf16.msra.mxu0 0
        %1044 = vmatprep.subr.bf16.mxu0 0
        %1045 = vmatpush2.bf16.msra.mxu0 0
        %1046 = vmatprep.subr.bf16.mxu0 0
        %1047 = vmatpush2.bf16.msra.mxu0 0
        %1048 = vmatprep.subr.bf16.mxu0 0
        %1049 = vmatpush2.bf16.msra.mxu0 0
        %1050 = vmatprep.subr.bf16.mxu0 0
        %1051 = vmatpush2.bf16.msra.mxu0 0
        %1052 = vmatprep.subr.bf16.mxu0 0
        %1053 = vmatpush2.bf16.msra.mxu0 0
        %1054 = vmatprep.mubr.bf16.mxu0 0
        %1055 = vmatmul.mubr.bf16.gmra.mxu0 %v943
        %v1056 = vpop.f32.mrf.mxu0
        %v1057 = vadd.f32 %v972, %v1056
        %v1058 = vpop.f32.mrf.mxu0
        %v1059 = vpop.f32.mrf.mxu0
        %v1060 = vadd.f32 %v972, %v1059
        %v1061 = vpop.f32.mrf.mxu0
        %1062 = vmatprep.mubr.bf16.mxu0 0
        %1063 = vmatmul.mubr.bf16.gmra.mxu0 %v944
        %v1064 = vpop.f32.mrf.mxu0
        %v1065 = vadd.f32 %v972, %v1064
        %v1066 = vpop.f32.mrf.mxu0
        %v1067 = vpop.f32.mrf.mxu0
        %v1068 = vadd.f32 %v972, %v1067
        %v1069 = vpop.f32.mrf.mxu0
        %1070 = vmatprep.mubr.bf16.mxu0 0
        %1071 = vmatmul.mubr.bf16.gmra.mxu0 %v945
        %v1072 = vpop.f32.mrf.mxu0
        %v1073 = vadd.f32 %v972, %v1072
        %v1074 = vpop.f32.mrf.mxu0
        %v1075 = vpop.f32.mrf.mxu0
        %v1076 = vadd.f32 %v972, %v1075
        %v1077 = vpop.f32.mrf.mxu0
        %1078 = vmatprep.mubr.bf16.mxu0 0
        %1079 = vmatmul.mubr.bf16.gmra.mxu0 %v946
        %v1080 = vpop.f32.mrf.mxu0
        %v1081 = vadd.f32 %v972, %v1080
        %v1082 = vpop.f32.mrf.mxu0
        %v1083 = vpop.f32.mrf.mxu0
        %v1084 = vadd.f32 %v972, %v1083
        %v1085 = vpop.f32.mrf.mxu0
        %1086 = vmatprep.mubr.bf16.mxu0 0
        %1087 = vmatmul.mubr.bf16.gmra.mxu0 %v947
        %v1088 = vpop.f32.mrf.mxu0
        %v1089 = vadd.f32 %v972, %v1088
        %v1090 = vpop.f32.mrf.mxu0
        %v1091 = vpop.f32.mrf.mxu0
        %v1092 = vadd.f32 %v972, %v1091
        %v1093 = vpop.f32.mrf.mxu0
        %1094 = vmatprep.mubr.bf16.mxu0 0
        %1095 = vmatmul.mubr.bf16.gmra.mxu0 %v948
        %v1096 = vpop.f32.mrf.mxu0
        %v1097 = vadd.f32 %v972, %v1096
        %v1098 = vpop.f32.mrf.mxu0
        %v1099 = vpop.f32.mrf.mxu0
        %v1100 = vadd.f32 %v972, %v1099
        %v1101 = vpop.f32.mrf.mxu0
        %1102 = vmatprep.mubr.bf16.mxu0 0
        %1103 = vmatmul.mubr.bf16.gmra.mxu0 %v949
        %v1104 = vpop.f32.mrf.mxu0
        %v1105 = vadd.f32 %v972, %v1104
        %v1106 = vpop.f32.mrf.mxu0
        %v1107 = vpop.f32.mrf.mxu0
        %v1108 = vadd.f32 %v972, %v1107
        %v1109 = vpop.f32.mrf.mxu0
        %1110 = vmatprep.mubr.bf16.mxu0 0
        %1111 = vmatmul.mubr.bf16.gmra.mxu0 %v950
        %v1112 = vpop.f32.mrf.mxu0
        %v1113 = vadd.f32 %v972, %v1112
        %v1114 = vpop.f32.mrf.mxu0
        %v1115 = vpop.f32.mrf.mxu0
        %v1116 = vadd.f32 %v972, %v1115
        %v1117 = vpop.f32.mrf.mxu0
        %1118 = vdwg.mxu0
        %v1119 = vld [vmem:[%s357] sm:$0xff]
        %v1120 = vld [vmem:[%s357 + $0x8] sm:$0xff]
        %v1121 = vld [vmem:[%s357 + $0x10] sm:$0xff]
        %v1122 = vld [vmem:[%s357 + $0x18] sm:$0xff]
        %v1123 = vld [vmem:[%s357 + $0x20] sm:$0xff]
        %v1124 = vld [vmem:[%s357 + $0x28] sm:$0xff]
        %v1125 = vld [vmem:[%s357 + $0x30] sm:$0xff]
        %v1126 = vld [vmem:[%s357 + $0x38] sm:$0xff]
        %v1127 = vld [vmem:[%s357 + $0x40] sm:$0xff]
        %v1128 = vld [vmem:[%s357 + $0x48] sm:$0xff]
        %v1129 = vld [vmem:[%s357 + $0x50] sm:$0xff]
        %v1130 = vld [vmem:[%s357 + $0x58] sm:$0xff]
        %v1131 = vld [vmem:[%s357 + $0x60] sm:$0xff]
        %v1132 = vld [vmem:[%s357 + $0x68] sm:$0xff]
        %v1133 = vld [vmem:[%s357 + $0x70] sm:$0xff]
        %v1134 = vld [vmem:[%s357 + $0x78] sm:$0xff]
        %1136 = vset.pattern.permute.xlu0 0
        %1137 = vperm.xlu0 %1136, %v1119
        %v1138 = vpop.permute.xlu0 %1137
        %1141 = vset.pattern.permute.xlu0 0
        %1142 = vperm.xlu0 %1141, %v1120
        %v1143 = vpop.permute.xlu0 %1142
        %1146 = vset.pattern.permute.xlu0 0
        %1147 = vperm.xlu0 %1146, %v1121
        %v1148 = vpop.permute.xlu0 %1147
        %1151 = vset.pattern.permute.xlu0 0
        %1152 = vperm.xlu0 %1151, %v1122
        %v1153 = vpop.permute.xlu0 %1152
        %1156 = vset.pattern.permute.xlu0 0
        %1157 = vperm.xlu0 %1156, %v1123
        %v1158 = vpop.permute.xlu0 %1157
        %1161 = vset.pattern.permute.xlu0 0
        %1162 = vperm.xlu0 %1161, %v1124
        %v1163 = vpop.permute.xlu0 %1162
        %1166 = vset.pattern.permute.xlu0 0
        %1167 = vperm.xlu0 %1166, %v1125
        %v1168 = vpop.permute.xlu0 %1167
        %1171 = vset.pattern.permute.xlu0 0
        %1172 = vperm.xlu0 %1171, %v1126
        %v1173 = vpop.permute.xlu0 %1172
        %1176 = vset.pattern.permute.xlu0 0
        %1177 = vperm.xlu0 %1176, %v1127
        %v1178 = vpop.permute.xlu0 %1177
        %1181 = vset.pattern.permute.xlu0 0
        %1182 = vperm.xlu0 %1181, %v1128
        %v1183 = vpop.permute.xlu0 %1182
        %1186 = vset.pattern.permute.xlu0 0
        %1187 = vperm.xlu0 %1186, %v1129
        %v1188 = vpop.permute.xlu0 %1187
        %1191 = vset.pattern.permute.xlu0 0
        %1192 = vperm.xlu0 %1191, %v1130
        %v1193 = vpop.permute.xlu0 %1192
        %1196 = vset.pattern.permute.xlu0 0
        %1197 = vperm.xlu0 %1196, %v1131
        %v1198 = vpop.permute.xlu0 %1197
        %1201 = vset.pattern.permute.xlu0 0
        %1202 = vperm.xlu0 %1201, %v1132
        %v1203 = vpop.permute.xlu0 %1202
        %1206 = vset.pattern.permute.xlu0 0
        %1207 = vperm.xlu0 %1206, %v1133
        %v1208 = vpop.permute.xlu0 %1207
        %1211 = vset.pattern.permute.xlu0 0
        %1212 = vperm.xlu0 %1211, %v1134
        %v1213 = vpop.permute.xlu0 %1212
        %v1215 = vmul.f32 %v1057, %v1138
        %v1216 = vmul.f32 %v1060, %v1143
        %v1217 = vmul.f32 %v1065, %v1148
        %v1218 = vmul.f32 %v1068, %v1153
        %v1219 = vmul.f32 %v1073, %v1158
        %v1220 = vmul.f32 %v1076, %v1163
        %v1221 = vmul.f32 %v1081, %v1168
        %v1222 = vmul.f32 %v1084, %v1173
        %v1223 = vmul.f32 %v1089, %v1178
        %v1224 = vmul.f32 %v1092, %v1183
        %v1225 = vmul.f32 %v1097, %v1188
        %v1226 = vmul.f32 %v1100, %v1193
        %v1227 = vmul.f32 %v1105, %v1198
        %v1228 = vmul.f32 %v1108, %v1203
        %v1229 = vmul.f32 %v1113, %v1208
        %v1230 = vmul.f32 %v1116, %v1213
        %v1231 = vpack.c.bf16 %v1216, %v1215
        %v1232 = vpack.c.bf16 %v1218, %v1217
        %v1233 = vpack.c.bf16 %v1220, %v1219
        %v1234 = vpack.c.bf16 %v1222, %v1221
        %v1235 = vpack.c.bf16 %v1224, %v1223
        %v1236 = vpack.c.bf16 %v1226, %v1225
        %v1237 = vpack.c.bf16 %v1228, %v1227
        %v1238 = vpack.c.bf16 %v1230, %v1229
        %v1247 = vunpack.c.l.b16 %v1231
        %v1248 = vunpack.c.h.b16 %v1231
        %v1249 = vunpack.c.l.b16 %v1232
        %v1250 = vunpack.c.h.b16 %v1232
        %v1251 = vunpack.c.l.b16 %v1233
        %v1252 = vunpack.c.h.b16 %v1233
        %v1253 = vunpack.c.l.b16 %v1234
        %v1254 = vunpack.c.h.b16 %v1234
        %v1255 = vunpack.c.l.b16 %v1235
        %v1256 = vunpack.c.h.b16 %v1235
        %v1257 = vunpack.c.l.b16 %v1236
        %v1258 = vunpack.c.h.b16 %v1236
        %v1259 = vunpack.c.l.b16 %v1237
        %v1260 = vunpack.c.h.b16 %v1237
        %v1261 = vunpack.c.l.b16 %v1238
        %v1262 = vunpack.c.h.b16 %v1238
        %v1263 = vpack.c.b16 %v1247, %v1247
        %v1264 = vpack.c.b16 %v1248, %v1248
        %v1265 = vpack.c.b16 %v1249, %v1249
        %v1266 = vpack.c.b16 %v1250, %v1250
        %v1267 = vpack.c.b16 %v1251, %v1251
        %v1268 = vpack.c.b16 %v1252, %v1252
        %v1269 = vpack.c.b16 %v1253, %v1253
        %v1270 = vpack.c.b16 %v1254, %v1254
        %v1271 = vpack.c.b16 %v1255, %v1255
        %v1272 = vpack.c.b16 %v1256, %v1256
        %v1273 = vpack.c.b16 %v1257, %v1257
        %v1274 = vpack.c.b16 %v1258, %v1258
        %v1275 = vpack.c.b16 %v1259, %v1259
        %v1276 = vpack.c.b16 %v1260, %v1260
        %v1277 = vpack.c.b16 %v1261, %v1261
        %v1278 = vpack.c.b16 %v1262, %v1262
        %1295 = vst [vmem:[%s389] sm:$0xf] %v1263
        %1296 = vst [vmem:[%s389 + $0x4] sm:$0xf] %v1264
        %1297 = vst [vmem:[%s389 + $0x8] sm:$0xf] %v1265
        %1298 = vst [vmem:[%s389 + $0xc] sm:$0xf] %v1266
        %1299 = vst [vmem:[%s389 + $0x10] sm:$0xf] %v1267
        %1300 = vst [vmem:[%s389 + $0x14] sm:$0xf] %v1268
        %1301 = vst [vmem:[%s389 + $0x18] sm:$0xf] %v1269
        %1302 = vst [vmem:[%s389 + $0x1c] sm:$0xf] %v1270
        %1303 = vst [vmem:[%s389 + $0x20] sm:$0xf] %v1271
        %1304 = vst [vmem:[%s389 + $0x24] sm:$0xf] %v1272
        %1305 = vst [vmem:[%s389 + $0x28] sm:$0xf] %v1273
        %1306 = vst [vmem:[%s389 + $0x2c] sm:$0xf] %v1274
        %1307 = vst [vmem:[%s389 + $0x30] sm:$0xf] %v1275
        %1308 = vst [vmem:[%s389 + $0x34] sm:$0xf] %v1276
        %1309 = vst [vmem:[%s389 + $0x38] sm:$0xf] %v1277
        %1310 = vst [vmem:[%s389 + $0x3c] sm:$0xf] %v1278
      $region48: #{smoe_forward.1} parent=43 // pred_fallthru
        _
      %p1311 = scmp.eq.s32.totalorder %s392, 0
      // Predicated region
      $region49: #{smoe_forward.1} parent=43 // pred_check
        %p1312 = pneg %p1311
      $region50: #{smoe_forward.1} parent=43 // pred_check_branch
        %1314 = sbr.rel (%p1312) target = $region52
      $region51: #{smoe_forward.1} parent=43 // pred_region
        %1315 = vst [vmem:[%s389] sm:$0xf] 0
        %1316 = vst [vmem:[%s389 + $0x4] sm:$0xf] 0
        %1317 = vst [vmem:[%s389 + $0x8] sm:$0xf] 0
        %1318 = vst [vmem:[%s389 + $0xc] sm:$0xf] 0
        %1319 = vst [vmem:[%s389 + $0x10] sm:$0xf] 0
        %1320 = vst [vmem:[%s389 + $0x14] sm:$0xf] 0
        %1321 = vst [vmem:[%s389 + $0x18] sm:$0xf] 0
        %1322 = vst [vmem:[%s389 + $0x1c] sm:$0xf] 0
        %1323 = vst [vmem:[%s389 + $0x20] sm:$0xf] 0
        %1324 = vst [vmem:[%s389 + $0x24] sm:$0xf] 0
        %1325 = vst [vmem:[%s389 + $0x28] sm:$0xf] 0
        %1326 = vst [vmem:[%s389 + $0x2c] sm:$0xf] 0
        %1327 = vst [vmem:[%s389 + $0x30] sm:$0xf] 0
        %1328 = vst [vmem:[%s389 + $0x34] sm:$0xf] 0
        %1329 = vst [vmem:[%s389 + $0x38] sm:$0xf] 0
        %1330 = vst [vmem:[%s389 + $0x3c] sm:$0xf] 0
      $region52: #{smoe_forward.1} parent=43 // pred_fallthru
        _
      %s1331 = smul.u32 16, %s29
      %p1332 = scmp.lt.s32.totalorder %s1331, 79
      %s1333 = scalar_select %p1332, %s1331, 79
      %s1334 = smul.addr %s1333, 4
      %s1335 = scalar_lea.vmem %s8, %s1334
      // Predicated region
      $region53: #{smoe_forward.1} parent=43 // pred_check
        %p1336 = pneg %p211
      $region54: #{smoe_forward.1} parent=43 // pred_check_branch
        %1338 = sbr.rel (%p1336) target = $region56
      $region55: #{smoe_forward.1} parent=43 // pred_region
        %s1339 = smul.u32 16, %s29
      $region56: #{smoe_forward.1} parent=43 // pred_fallthru
        _
    $region44: #{smoe_forward.1} parent=5 // pred_fallthru
      _
    %p1340 = scmp.le.s32.totalorder 2, %s24
    // Predicated region
    $region57: #{smoe_forward.1} parent=5 // pred_check
      %p1341 = pneg %p1340
    $region58: #{smoe_forward.1} parent=5 // pred_check_branch
      %1343 = sbr.rel (%p1341) target = $region60
    $region59: #{smoe_forward.1} parent=5 // pred_region
      %s1344 = ssub.s32 %s24, 2
      // Predicated region
      $region61: #{smoe_forward.1} parent=59 // pred_check
        %p1345 = pneg %p217
      $region62: #{smoe_forward.1} parent=59 // pred_check_branch
        %1347 = sbr.rel (%p1345) target = $region64
      $region63: #{smoe_forward.1} parent=59 // pred_region
        %s1348 = smul.u32 16, %s30
        %p1349 = scmp.lt.s32.totalorder %s1348, 79
        %s1350 = scalar_select %p1349, %s1348, 79
        %s1351 = smul.addr %s1350, 4
        %s1352 = scalar_lea.vmem %s8, %s1351
      $region64: #{smoe_forward.1} parent=59 // pred_fallthru
        _
    $region60: #{smoe_forward.1} parent=5 // pred_fallthru
      _
  $region6: #{smoe_forward.1} parent=0 // loop_footer
    %s28 = sadd.s32 1, %s24
  $region7: #{smoe_forward.1} parent=0 // loop_footer_branch
    %23 = sbr.rel target = $region3
  $region8: #{smoe_forward.1} parent=0 // loop_exit
    _

</llo_original>
